<compile_context>
chip_gen: v5e
topology: v5e:2x2
jax: 0.10.0
libtpu: 0.0.40
codegen_flags: <defaults>
</compile_context>

<pallas_src>
import jax
import jax.numpy as jnp
from jax import lax
from jax.experimental import pallas as pl
from jax.experimental.pallas import tpu as pltpu


def _round_up(x, m):
    return ((x + m - 1) // m) * m


def _sublane_multiple(dtype):
    # sublane packing of one 32-bit vreg row: f32 -> 8, bf16 -> 16, int8 -> 32
    return {4: 8, 2: 16, 1: 32}.get(jnp.dtype(dtype).itemsize, 8)


def _default_per_buffer_bytes():
    # ~12 MiB per input buffer => ~24-30 MiB resident with double-buffering,
    # output blocks and scratch: amortizes the ~0.35 us/step grid overhead on
    # v6e/v7x while staying well under v7x's 64 MiB/TC physical VMEM
    # (v5e/v6e have 128 MiB physical; the scoped default is raised explicitly
    # via vmem_limit_bytes below).
    try:
        cap = pltpu.get_tpu_info().vmem_capacity_bytes
    except Exception:
        cap = 64 * 1024 * 1024  # conservative (v7x per-TC)
    return int(max(2 * 1024 * 1024, min(12 * 1024 * 1024, cap // 5)))


def _direct_kernel(x_ref, o_ref):
    # Single reduction step covers all of HW: plain lane-axis reduce of the
    # resident tile (the block's lane extent equals the full HW dim, so Mosaic
    # handles the physical lane padding itself -> no masking needed).
    o_ref[...] = jnp.sum(x_ref[...].astype(jnp.float32), axis=-1,
                         keepdims=True).astype(o_ref.dtype)


def _make_tiled_kernel(rb, thw, hw_total, lane_chunk, needs_mask):
    """HW-tiled reduction with a lane-dense f32 accumulator.

    Grid = (row_blocks, hw_blocks); the hw axis is the reduction ("arbitrary").
    Steady state is VPU adds of 128-lane chunks read straight from the input
    ref (bounds live vreg ranges for bf16 upcasts); the cross-lane XLU reduce
    and the narrow (rb, 1) store happen only on the last step.
    """
    n_chunks = thw // lane_chunk

    def kernel(x_ref, o_ref, acc_ref):
        k = pl.program_id(1)

        @pl.when(k == 0)
        def _():
            acc_ref[...] = jnp.zeros_like(acc_ref)

        if needs_mask:
            # hoisted: JAX does not CSE broadcast_in_dim inside the chunk loop
            lane_iota = lax.broadcasted_iota(jnp.int32, (rb, lane_chunk), 1)
            base = k * thw

        def add_chunk(c):
            start = pl.multiple_of(c * lane_chunk, lane_chunk)
            xc = x_ref[:, pl.ds(start, lane_chunk)].astype(jnp.float32)
            if needs_mask:
                xc = jnp.where(base + start + lane_iota < hw_total, xc, 0.0)
            acc_ref[...] += xc

        if n_chunks <= 8:
            for c in range(n_chunks):
                add_chunk(c)
        else:
            def body(c, carry):
                add_chunk(c)
                return carry

            lax.fori_loop(0, n_chunks, body, 0, unroll=8)

        @pl.when(k == pl.num_programs(1) - 1)
        def _():
            o_ref[...] = jnp.sum(acc_ref[...], axis=-1,
                                 keepdims=True).astype(o_ref.dtype)

    return kernel


def gcblock(x, w=None, b=None, *, per_buffer_bytes=None):
    """GCBlock forward. x: (B, C, H, W). Returns (B, C, 1, 1).

    w ((1, C, 1, 1)) and b ((1,)) are accepted for parity with the PyTorch
    module but are mathematically dead in this forward pass (softmax over a
    size-1 channel axis is identically 1.0), so they are not read by the
    kernel.
    """
    B, C, H, W = x.shape
    HW = H * W
    R = B * C
    dtype = x.dtype
    itemsize = jnp.dtype(dtype).itemsize
    sub = _sublane_multiple(dtype)

    if per_buffer_bytes is None:
        per_buffer_bytes = _default_per_buffer_bytes()
    per_buffer_bytes = int(min(max(per_buffer_bytes, 64 * 1024),
                               20 * 1024 * 1024))
    max_tile_elems = max(sub * 128, per_buffer_bytes // itemsize)

    # Layout-preserving reshape of contiguous NCHW -> (B*C, HW); no HBM copy,
    # no jnp.pad (ragged tails are masked in-kernel instead).
    x2 = x.reshape(R, HW)

    # ---- HW (lane) tiling -------------------------------------------------
    hw128 = _round_up(HW, 128)
    max_lanes = max(128, ((max_tile_elems // sub) // 128) * 128)
    if hw128 <= max_lanes:
        block_lanes = HW            # full extent: no 128-multiple rule, no mask
        n_hw = 1
    else:
        block_lanes = max_lanes     # multiple of 128
        n_hw = pl.cdiv(HW, block_lanes)

    lane_chunk = 128
    # ---- row (sublane) tiling ---------------------------------------------
    # Per-row VMEM cost including lane padding of the input block, the padded
    # (rb, 1) output block and (if tiled) the lane-dense f32 accumulator.
    per_row_cost = (_round_up(block_lanes, 128) * itemsize
                    + 128 * itemsize
                    + (lane_chunk * 4 if n_hw > 1 else 0))
    rows_fit = max(1, per_buffer_bytes // per_row_cost)
    if R <= sub:
        rb = R                      # block spans all rows (always legal)
    else:
        rb = min(R, max(sub, (rows_fit // sub) * sub))
        if rb >= R:
            # Keep >= 2 blocks on the parallel axis so both v7x TensorCores
            # get work (no-op on single-core v5e/v6e).
            rb = max(sub, _round_up(pl.cdiv(R, 2), sub))
    n_rows = pl.cdiv(R, rb)
    # TODO(synk): when B*C <= the sublane pack (n_rows == 1) and HW is large,
    # also split the HW sum into two parallel halves so the second v7x
    # TensorCore is not idle; at these tiny row counts single-core is fine.

    # ---- VMEM accounting + explicit scoped limit ---------------------------
    rb_phys = _round_up(rb, sub)
    in_tile = rb_phys * _round_up(block_lanes, 128) * itemsize
    out_tile = rb_phys * 128 * itemsize
    acc_bytes = _round_up(rb, 8) * lane_chunk * 4 if n_hw > 1 else 0
    vmem_limit = int(2 * in_tile + 2 * out_tile + acc_bytes + (4 << 20))

    out_shape = jax.ShapeDtypeStruct((R, 1), dtype)

    if n_hw == 1:
        out = pl.pallas_call(
            _direct_kernel,
            out_shape=out_shape,
            grid=(n_rows,),
            in_specs=[pl.BlockSpec((rb, block_lanes), lambda i: (i, 0))],
            out_specs=pl.BlockSpec((rb, 1), lambda i: (i, 0)),
            compiler_params=pltpu.CompilerParams(
                dimension_semantics=("parallel",),
                vmem_limit_bytes=vmem_limit),
        )(x2)
    else:
        needs_mask = (n_hw * block_lanes) != HW
        kernel = _make_tiled_kernel(rb, block_lanes, HW, lane_chunk, needs_mask)
        out = pl.pallas_call(
            kernel,
            out_shape=out_shape,
            grid=(n_rows, n_hw),
            in_specs=[pl.BlockSpec((rb, block_lanes), lambda i, k: (i, k))],
            out_specs=pl.BlockSpec((rb, 1), lambda i, k: (i, 0)),
            scratch_shapes=[pltpu.VMEM((rb, lane_chunk), jnp.float32)],
            compiler_params=pltpu.CompilerParams(
                dimension_semantics=("parallel", "arbitrary"),
                vmem_limit_bytes=vmem_limit),
        )(x2)

    return out.reshape(B, C, 1, 1)


def gcblock_ref(x, w, b):
    """Pure-JAX reference mirroring the full PyTorch forward (conv + softmax)."""
    B, C, H, W = x.shape
    xf = x.astype(jnp.float32)
    init = xf.reshape(B, C, H * W)[:, None, :, :]                    # (B,1,C,HW)
    logits = jnp.einsum('bchw,c->bhw', xf,
                        w.reshape(C).astype(jnp.float32)) + b[0]     # (B,H,W)
    attn = jax.nn.softmax(logits[:, None, :, :], axis=1)             # (B,1,H,W)
    attn = attn.reshape(B, 1, H * W, 1)                              # (B,1,HW,1)
    return jnp.matmul(init, attn,
                      precision=lax.Precision.HIGHEST).reshape(B, C, 1, 1)


if __name__ == "__main__":
    key = jax.random.PRNGKey(0)

    def make_inputs(k, B, C, H, W, dtype):
        kx, kw, kb = jax.random.split(k, 3)
        x = jax.random.normal(kx, (B, C, H, W), dtype=jnp.float32).astype(dtype)
        w = jax.random.normal(kw, (1, C, 1, 1), dtype=jnp.float32) * 0.1
        b = jax.random.normal(kb, (1,), dtype=jnp.float32) * 0.1
        return x, w, b

    k1, k2, k3, k4 = jax.random.split(key, 4)

    # 1) primary small case implied by the module (B=2, C=4, 16x16 spatial)
    x, w, b = make_inputs(k1, 2, 4, 16, 16, jnp.float32)
    out = jax.block_until_ready(gcblock(x, w, b))
    assert out.shape == (2, 4, 1, 1)
    assert jnp.allclose(out, gcblock_ref(x, w, b), atol=1e-4, rtol=1e-4)

    # 2) ragged rows (B*C=15) and HW not a multiple of 128 (9x11)
    x, w, b = make_inputs(k2, 3, 5, 9, 11, jnp.float32)
    out = jax.block_until_ready(gcblock(x, w, b))
    assert jnp.allclose(out, gcblock_ref(x, w, b), atol=1e-4, rtol=1e-4)

    # 3) bf16 input (sublane pack = 16, f32 accumulation inside the kernel)
    x, w, b = make_inputs(k3, 2, 6, 8, 8, jnp.bfloat16)
    out = jax.block_until_ready(gcblock(x, w, b))
    assert jnp.allclose(out.astype(jnp.float32), gcblock_ref(x, w, b),
                        atol=2e-1, rtol=2e-2)

    # 4) force the HW-tiled reduction path (masked ragged tail, fori_loop
    #    chunk accumulation, 2 parallel row blocks) with a tiny budget so the
    #    test tensor stays small.
    x, w, b = make_inputs(k4, 2, 5, 60, 70, jnp.float32)
    out = jax.block_until_ready(gcblock(x, w, b, per_buffer_bytes=64 * 1024))
    assert jnp.allclose(out, gcblock_ref(x, w, b), atol=5e-3, rtol=1e-4)

    print("KERNEL_OK")
</pallas_src>

<mosaic_0001>
module attributes {stable_mosaic.version = 11 : i64} {
  func.func @_direct_kernel(%arg0: i32, %arg1: memref<8x256xf32, #tpu.memory_space<vmem>>, %arg2: memref<8x1xf32, #tpu.memory_space<vmem>>) attributes {dimension_semantics = [#tpu.dimension_semantics<parallel>], iteration_bounds = array<i64: 1>, scalar_prefetch = 0 : i64, scratch_operands = 0 : i64, tpu.core_type = #tpu.core_type<tc>, window_params = [{transform_indices = @transform_0, window_bounds = array<i64: 8, 256>}, {transform_indices = @transform_1, window_bounds = array<i64: 8, 1>}]} {
    %c0 = arith.constant 0 : index
    %c0_0 = arith.constant 0 : index
    %0 = vector.load %arg1[%c0, %c0_0] : memref<8x256xf32, #tpu.memory_space<vmem>>, vector<8x256xf32>
    %cst = arith.constant dense<0.000000e+00> : vector<8xf32>
    %1 = vector.multi_reduction <add>, %0, %cst [1] : vector<8x256xf32> to vector<8xf32>
    %2 = vector.shape_cast %1 : vector<8xf32> to vector<8x1xf32>
    %c0_1 = arith.constant 0 : index
    %c0_2 = arith.constant 0 : index
    %3 = vector.load %arg2[%c0_1, %c0_2] : memref<8x1xf32, #tpu.memory_space<vmem>>, vector<8x1xf32>
    tpu.vector_store %arg2[%c0_1, %c0_2], %2 {strides = array<i32>} : memref<8x1xf32, #tpu.memory_space<vmem>>, vector<8x1xf32>,
    return
  }
  func.func @transform_0(%arg0: i32) -> (i32, i32) {
    %c0_i32 = arith.constant 0 : i32
    %c0_i32_0 = arith.constant 0 : i32
    return %arg0, %c0_i32 : i32, i32
  }
  func.func @transform_1(%arg0: i32) -> (i32, i32) {
    %c0_i32 = arith.constant 0 : i32
    %c0_i32_0 = arith.constant 0 : i32
    return %arg0, %c0_i32 : i32, i32
  }
}

</mosaic_0001>

<llo_original>
// kernel: tpu_custom_call.1
$region0: #{tpu_custom_call.1}
  #allocation0 [shape = 'u32[]', space=smem, size = 0x4, offset = 0x4, fixed_abs, tag = 'smem constant byte address 0x4 - core index']
  #allocation1 [shape = 'u32[72,128]{1,0:T(1,128)}', space=vmem, size = 0x9000, scoped, tag = 'internal scratch']
  %s0 = inlined_call_operand.hbm [shape: f32[8,256], index: 0, kind: input, shape index: {}]
  %s1 = inlined_call_operand.vmem [shape: f32[8,1], index: 1, kind: output, shape index: {}]
  %s2 = sld [smem:[#allocation0]]
  $region18: #{tpu_custom_call.1} parent=0
    _
  %s4 = ssub.s32 1, %s2
  %s5 = scalar_select 0, %s4, %s2
  $region1: #{tpu_custom_call.1} parent=0
    #allocation2 [shape = 'u8[8192]{0}', space=vmem, size = 0x2000, scoped, tag = 'input window, operand 0, single buffered']
    #allocation3 [shape = 's32[1]{0}', space=sflag, size = 0x4, scoped, tag = 'scoped memory for tpu_custom_call.1']
    %6 = vsyncpa [#allocation3], 0
    // Predicated region
    $region2: #{tpu_custom_call.1} parent=1 // pred_check
      _
    $region3: #{tpu_custom_call.1} parent=1 // pred_check_branch
      %8 = sbr.rel (0) target = $region5
    $region4: #{tpu_custom_call.1} parent=1 // pred_region
      %10 = vsyncadd [#allocation3], 0
      %s12 = sshll.u32 %s0, 4
      %s13 = int_to_ptr.hbm [resolvable:$true] %s12
      %s14 = sshll.u32 [#allocation2], 4
      %s15 = int_to_ptr.vmem [resolvable:$true] %s14
      %17 = dma.hbm_to_vmem [thread:$0]  %s13, 256, %s15, [#allocation3]
    $region5: #{tpu_custom_call.1} parent=1 // pred_fallthru
      _
    // Predicated region
    $region6: #{tpu_custom_call.1} parent=1 // pred_check
      _
    $region7: #{tpu_custom_call.1} parent=1 // pred_check_branch
      %19 = sbr.rel (0) target = $region9
    $region8: #{tpu_custom_call.1} parent=1 // pred_region
      %21 = dma.done [#allocation3], 256
    $region9: #{tpu_custom_call.1} parent=1 // pred_fallthru
      _
    %v22 = vld [vmem:[#allocation2] sm:$0xff]
    %v23 = vld [vmem:[#allocation2 + $0x8] sm:$0xff]
    %v24 = vadd.f32 %v22, %v23
    %25 = vadd.xlane.f32.xlu0 %v24
    %v26 = vpop.xlane.xlu0 %25
    %vm27 = vcmask 7168
    %28 = vst.msk [vmem:[%s1] sm:$0xff] %vm27, %v26
    // Predicated region
    $region10: #{tpu_custom_call.1} parent=1 // pred_check
      _
    $region11: #{tpu_custom_call.1} parent=1 // pred_check_branch
      %30 = sbr.rel (0) target = $region13
    $region12: #{tpu_custom_call.1} parent=1 // pred_region
      _
    $region13: #{tpu_custom_call.1} parent=1 // pred_fallthru
      _
    // Predicated region
    $region14: #{tpu_custom_call.1} parent=1 // pred_check
      _
    $region15: #{tpu_custom_call.1} parent=1 // pred_check_branch
      %32 = sbr.rel (0) target = $region17
    $region16: #{tpu_custom_call.1} parent=1 // pred_region
      _
    $region17: #{tpu_custom_call.1} parent=1 // pred_fallthru
      _
    %33 = vsyncpa [#allocation3], 1

</llo_original>
